<compile_context>
chip_gen: v6e
topology: v6e:2x2x1
jax: 0.10.0
libtpu: 0.0.40
codegen_flags: <defaults>
</compile_context>

<pallas_src>
import numpy as np
import jax
import jax.numpy as jnp
from jax.experimental import pallas as pl
from jax.experimental.pallas import tpu as pltpu


# ----------------------------- config ---------------------------------------
class Config:
    hidden_size = 32            # toy size for the built-in test; YOLOS uses 768
    hidden_dropout_prob = 0.0   # nn.Dropout is identity at inference


# ----------------------------- Pallas kernel --------------------------------
def self_output_kernel(x_ref, w_ref, b_ref, o_ref):
    # x_ref: (tm, H) bf16 activations
    # w_ref: (H, H)  bf16 weight, already in (in, out) layout -> plain MXU matmul
    # b_ref: (1, H)  f32 bias
    # o_ref: (tm, H) model dtype
    y = jnp.dot(x_ref[...], w_ref[...], preferred_element_type=jnp.float32)
    o_ref[...] = (y + b_ref[...]).astype(o_ref.dtype)
    # TODO(synk): residual add / LayerNorm fusion belongs to YolosLayer, not this
    # module — not fused here to preserve the module's forward semantics.


# ----------------------------- wrapper ---------------------------------------
def yolos_self_output(hidden_states, input_tensor, params, config, *,
                      block_m=1024, matmul_dtype=jnp.bfloat16,
                      deterministic=True):
    """YolosSelfOutput.forward.  `input_tensor` is unused by the module."""
    del input_tensor  # residual connection lives in YolosLayer, not here
    if (not deterministic) and config.hidden_dropout_prob > 0.0:
        # TODO(synk): training-mode dropout not implemented (inference = identity).
        raise NotImplementedError("training-mode dropout is not implemented")

    B, S, H = hidden_states.shape
    M = B * S
    out_dtype = hidden_states.dtype

    # bf16 matmul datapath; accumulation stays f32 inside the kernel.
    x = hidden_states.reshape(M, H).astype(matmul_dtype)
    # One-time (in, out) transpose outside the hot loop — the kernel never sees
    # a transposed RHS operand.
    w = jnp.asarray(params['dense_w']).T.astype(matmul_dtype)
    b = jnp.asarray(params['dense_b']).reshape(1, H).astype(jnp.float32)

    # Row tiling: big lane-dense slabs.  No pad/slice — Pallas masks the ragged
    # last block (safe because rows are independent).
    tm = min(block_m, M)
    grid = (pl.cdiv(M, tm),)

    act_bytes = jnp.dtype(matmul_dtype).itemsize
    cost = pl.CostEstimate(
        flops=2 * M * H * H,
        transcendentals=0,
        bytes_accessed=(M * H * act_bytes                       # activations in
                        + H * H * act_bytes                     # weight
                        + H * 4                                 # bias
                        + M * H * jnp.dtype(out_dtype).itemsize))  # output

    out = pl.pallas_call(
        self_output_kernel,
        out_shape=jax.ShapeDtypeStruct((M, H), out_dtype),
        grid_spec=pltpu.PrefetchScalarGridSpec(
            num_scalar_prefetch=0,
            grid=grid,
            in_specs=[
                pl.BlockSpec((tm, H), lambda i: (i, 0)),   # activation rows
                pl.BlockSpec((H, H), lambda i: (0, 0)),    # grid-invariant weight
                pl.BlockSpec((1, H), lambda i: (0, 0)),    # grid-invariant bias
            ],
            out_specs=pl.BlockSpec((tm, H), lambda i: (i, 0)),
        ),
        compiler_params=pltpu.CompilerParams(
            dimension_semantics=("parallel",)),   # megacore-shardable M axis
        cost_estimate=cost,
    )(x, w, b)

    return out.reshape(B, S, H)


# ----------------------------- pure-JAX reference ---------------------------
def reference(hidden_states, input_tensor, params, config):
    del input_tensor
    y = jnp.einsum('bsh,oh->bso', hidden_states, params['dense_w'])
    return y + params['dense_b']


if __name__ == "__main__":
    cfg = Config()
    key = jax.random.PRNGKey(0)
    k_w, k_b, k_x, k_in = jax.random.split(key, 4)

    B, S, H = 2, 8, cfg.hidden_size

    params = {
        'dense_w': 0.02 * jax.random.normal(k_w, (H, H), jnp.float32),
        'dense_b': 0.02 * jax.random.normal(k_b, (H,), jnp.float32),
    }
    hidden_states = jax.random.normal(k_x, (B, S, H), jnp.float32)
    input_tensor = jax.random.normal(k_in, (B, S, H), jnp.float32)  # unused

    out = yolos_self_output(hidden_states, input_tensor, params, cfg)
    out = jax.block_until_ready(out)

    ref = reference(hidden_states, input_tensor, params, cfg)
    assert out.shape == ref.shape
    # bf16 matmul datapath (f32 accumulation) vs f32 reference -> loosened tol.
    np.testing.assert_allclose(np.asarray(out), np.asarray(ref),
                               rtol=2e-2, atol=2e-2)
    print("KERNEL_OK")
</pallas_src>

<mosaic_0001>
module attributes {stable_mosaic.version = 11 : i64} {
  func.func @self_output_kernel(%arg0: i32, %arg1: memref<16x32xbf16, #tpu.memory_space<vmem>>, %arg2: memref<32x32xbf16, #tpu.memory_space<vmem>>, %arg3: memref<1x32xf32, #tpu.memory_space<vmem>>, %arg4: memref<16x32xf32, #tpu.memory_space<vmem>>) attributes {dimension_semantics = [#tpu.dimension_semantics<parallel>], iteration_bounds = array<i64: 1>, scalar_prefetch = 0 : i64, scratch_operands = 0 : i64, tpu.core_type = #tpu.core_type<tc>, window_params = [{transform_indices = @transform_0, window_bounds = array<i64: 16, 32>}, {pipeline_mode = #tpu.pipeline_mode<synchronous>, transform_indices = @transform_1, window_bounds = array<i64: 32, 32>}, {pipeline_mode = #tpu.pipeline_mode<synchronous>, transform_indices = @transform_2, window_bounds = array<i64: 1, 32>}, {transform_indices = @transform_3, window_bounds = array<i64: 16, 32>}]} {
    %c0 = arith.constant 0 : index
    %c0_0 = arith.constant 0 : index
    %0 = vector.load %arg1[%c0, %c0_0] : memref<16x32xbf16, #tpu.memory_space<vmem>>, vector<16x32xbf16>
    %c0_1 = arith.constant 0 : index
    %c0_2 = arith.constant 0 : index
    %1 = vector.load %arg2[%c0_1, %c0_2] : memref<32x32xbf16, #tpu.memory_space<vmem>>, vector<32x32xbf16>
    %cst = arith.constant dense<0.000000e+00> : vector<16x32xf32>
    %2 = tpu.matmul %0, %1, %cst {dimension_numbers = #tpu.dot_dimension_numbers<[1], [0], [0], [1], [0, 0, 1, 1], [], []>} : vector<16x32xbf16>, vector<32x32xbf16>, vector<16x32xf32> -> vector<16x32xf32>
    %c0_3 = arith.constant 0 : index
    %c0_4 = arith.constant 0 : index
    %3 = vector.load %arg3[%c0_3, %c0_4] : memref<1x32xf32, #tpu.memory_space<vmem>>, vector<1x32xf32>
    %4 = vector.broadcast %3 : vector<1x32xf32> to vector<16x32xf32>
    %5 = arith.addf %2, %4 : vector<16x32xf32>
    %c0_5 = arith.constant 0 : index
    %c0_6 = arith.constant 0 : index
    %6 = vector.load %arg4[%c0_5, %c0_6] : memref<16x32xf32, #tpu.memory_space<vmem>>, vector<16x32xf32>
    tpu.vector_store %arg4[%c0_5, %c0_6], %5 {strides = array<i32>} : memref<16x32xf32, #tpu.memory_space<vmem>>, vector<16x32xf32>,
    return
  }
  func.func @transform_0(%arg0: i32) -> (i32, i32) {
    %c0_i32 = arith.constant 0 : i32
    %c0_i32_0 = arith.constant 0 : i32
    return %arg0, %c0_i32 : i32, i32
  }
  func.func @transform_1(%arg0: i32) -> (i32, i32) {
    %c0_i32 = arith.constant 0 : i32
    %c0_i32_0 = arith.constant 0 : i32
    %c0_i32_1 = arith.constant 0 : i32
    return %c0_i32, %c0_i32_0 : i32, i32
  }
  func.func @transform_2(%arg0: i32) -> (i32, i32) {
    %c0_i32 = arith.constant 0 : i32
    %c0_i32_0 = arith.constant 0 : i32
    %c0_i32_1 = arith.constant 0 : i32
    return %c0_i32, %c0_i32_0 : i32, i32
  }
  func.func @transform_3(%arg0: i32) -> (i32, i32) {
    %c0_i32 = arith.constant 0 : i32
    %c0_i32_0 = arith.constant 0 : i32
    return %arg0, %c0_i32 : i32, i32
  }
}

</mosaic_0001>

<llo_original>
// kernel: tpu_custom_call.1
$region0: #{tpu_custom_call.1}
  #allocation0 [shape = 'u32[]', space=smem, size = 0x4, offset = 0x4, fixed_abs, tag = 'smem constant byte address 0x4 - core index']
  #allocation1 [shape = 'u32[144,128]{1,0:T(1,128)}', space=vmem, size = 0x12000, scoped, tag = 'internal scratch']
  %s0 = inlined_call_operand.hbm [shape: bf16[16,32], index: 0, kind: input, shape index: {}]
  %s1 = inlined_call_operand.hbm [shape: bf16[32,32], index: 1, kind: input, shape index: {}]
  %s2 = inlined_call_operand.vmem [shape: f32[1,32], index: 2, kind: input, shape index: {}]
  %s3 = inlined_call_operand.hbm [shape: f32[16,32], index: 3, kind: output, shape index: {}]
  %s4 = sld [smem:[#allocation0]]
  $region30: #{tpu_custom_call.1} parent=0
    _
  %s6 = ssub.s32 1, %s4
  %s7 = scalar_select 0, %s6, %s4
  $region1: #{tpu_custom_call.1} parent=0
    #allocation2 [shape = 'u8[4096]{0}', space=vmem, size = 0x1000, scoped, tag = 'input window, operand 0, single buffered']
    #allocation3 [shape = 's32[1]{0}', space=sflag, size = 0x4, scoped, tag = 'scoped memory for tpu_custom_call.1']
    #allocation4 [shape = 's32[1]{0}', space=sflag, size = 0x4, scoped, tag = 'scoped memory for tpu_custom_call.1']
    #allocation5 [shape = 'u8[8192]{0}', space=vmem, size = 0x2000, scoped, tag = 'input window, operand 1, single buffered']
    #allocation6 [shape = 's32[1]{0}', space=sflag, size = 0x4, scoped, tag = 'scoped memory for tpu_custom_call.1']
    #allocation7 [shape = 'u8[8192]{0}', space=vmem, size = 0x2000, scoped, tag = 'output window, operand 0, single buffered']
    %8 = vsyncpa [#allocation3], 0
    %9 = vsyncpa [#allocation6], 0
    %10 = vsyncpa [#allocation4], 0
    // Predicated region
    $region2: #{tpu_custom_call.1} parent=1 // pred_check
      _
    $region3: #{tpu_custom_call.1} parent=1 // pred_check_branch
      %12 = sbr.rel (0) target = $region5
    $region4: #{tpu_custom_call.1} parent=1 // pred_region
      %s14 = ssub.s32 128, 128
      %15 = vsyncadd [#allocation3], %s14
      %s16 = sshll.u32 [#allocation2], 4
      %s17 = int_to_ptr.vmem [resolvable:$true] %s16
      %22 = dma.hbm_to_vmem [thread:$0]  %s0, 128, %s17, [#allocation3], 64, 64, 4
    $region5: #{tpu_custom_call.1} parent=1 // pred_fallthru
      _
    // Predicated region
    $region6: #{tpu_custom_call.1} parent=1 // pred_check
      _
    $region7: #{tpu_custom_call.1} parent=1 // pred_check_branch
      %24 = sbr.rel (0) target = $region9
    $region8: #{tpu_custom_call.1} parent=1 // pred_region
      %s26 = ssub.s32 256, 256
      %27 = vsyncadd [#allocation6], %s26
      %s28 = sshll.u32 [#allocation5], 4
      %s29 = int_to_ptr.vmem [resolvable:$true] %s28
      %34 = dma.hbm_to_vmem [thread:$0]  %s1, 256, %s29, [#allocation6], 64, 64, 4
    $region9: #{tpu_custom_call.1} parent=1 // pred_fallthru
      _
    // Predicated region
    $region10: #{tpu_custom_call.1} parent=1 // pred_check
      _
    $region11: #{tpu_custom_call.1} parent=1 // pred_check_branch
      %36 = sbr.rel (0) target = $region13
    $region12: #{tpu_custom_call.1} parent=1 // pred_region
      _
    $region13: #{tpu_custom_call.1} parent=1 // pred_fallthru
      _
    // Predicated region
    $region14: #{tpu_custom_call.1} parent=1 // pred_check
      _
    $region15: #{tpu_custom_call.1} parent=1 // pred_check_branch
      %38 = sbr.rel (0) target = $region17
    $region16: #{tpu_custom_call.1} parent=1 // pred_region
      %39 = dma.done [#allocation3], 128
    $region17: #{tpu_custom_call.1} parent=1 // pred_fallthru
      _
    // Predicated region
    $region18: #{tpu_custom_call.1} parent=1 // pred_check
      _
    $region19: #{tpu_custom_call.1} parent=1 // pred_check_branch
      %41 = sbr.rel (0) target = $region21
    $region20: #{tpu_custom_call.1} parent=1 // pred_region
      %42 = dma.done [#allocation6], 256
    $region21: #{tpu_custom_call.1} parent=1 // pred_fallthru
      _
    %v44 = vld [vmem:[#allocation2] sm:$0xf]
    %v45 = vld [vmem:[#allocation2 + $0x4] sm:$0xf]
    %v46 = vld [vmem:[#allocation5] sm:$0xf]
    %v47 = vld [vmem:[#allocation5 + $0x4] sm:$0xf]
    %v48 = vld [vmem:[#allocation5 + $0x8] sm:$0xf]
    %v49 = vld [vmem:[#allocation5 + $0xc] sm:$0xf]
    %v50 = vld [vmem:[%s2] sm:$0x1]
    %v52 = vlaneseq
    %v53 = vshrl.u32 %v52, 7
    %v54 = vsub.s32 0, %v53
    %v55 = vrot.slane %v50, %v54
    %v59 = vunpack.c.l.b16 %v44
    %v60 = vunpack.c.l.b16 %v45
    %v61 = vpack.c.b16 %v60, %v59
    %v66 = vunpack.c.l.b16 %v46
    %v67 = vunpack.c.l.b16 %v47
    %v68 = vunpack.c.l.b16 %v48
    %v69 = vunpack.c.l.b16 %v49
    %v70 = vpack.c.b16 %v67, %v66
    %v71 = vpack.c.b16 %v69, %v68
    %vm74 = vcmask 261120
    %v76 = vsel %vm74, %v61, 0
    %78 = vmatprep.subr.bf16.mxu0 0
    %79 = vmatpush1.bf16.msra.mxu0 0
    %80 = vmatprep.subr.bf16.mxu0 0
    %81 = vmatpush1.bf16.msra.mxu0 0
    %82 = vmatprep.subr.bf16.mxu0 0
    %83 = vmatpush1.bf16.msra.mxu0 0
    %84 = vmatprep.subr.bf16.mxu0 0
    %85 = vmatpush1.bf16.msra.mxu0 0
    %86 = vmatprep.subr.bf16.mxu0 0
    %87 = vmatpush1.bf16.msra.mxu0 0
    %88 = vmatprep.subr.bf16.mxu0 0
    %89 = vmatpush1.bf16.msra.mxu0 0
    %90 = vmatprep.subr.bf16.mxu0 0
    %91 = vmatpush1.bf16.msra.mxu0 %v71
    %92 = vmatprep.subr.bf16.mxu0 0
    %93 = vmatpush1.bf16.msra.mxu0 %v70
    %94 = vmatprep.subr.bf16.mxu0 0
    %95 = vmatpush2.bf16.msra.mxu0 0
    %96 = vmatprep.subr.bf16.mxu0 0
    %97 = vmatpush2.bf16.msra.mxu0 0
    %98 = vmatprep.subr.bf16.mxu0 0
    %99 = vmatpush2.bf16.msra.mxu0 0
    %100 = vmatprep.subr.bf16.mxu0 0
    %101 = vmatpush2.bf16.msra.mxu0 0
    %102 = vmatprep.subr.bf16.mxu0 0
    %103 = vmatpush2.bf16.msra.mxu0 0
    %104 = vmatprep.subr.bf16.mxu0 0
    %105 = vmatpush2.bf16.msra.mxu0 0
    %106 = vmatprep.subr.bf16.mxu0 0
    %107 = vmatpush2.bf16.msra.mxu0 0
    %108 = vmatprep.subr.bf16.mxu0 0
    %109 = vmatpush2.bf16.msra.mxu0 0
    %110 = vmatprep.mubr.bf16.mxu0 0
    %111 = vmatmul.mubr.bf16.gmra.mxu0 %v76
    %v112 = vpop.f32.mrf.mxu0
    %v113 = vadd.f32 %v55, %v112
    %v114 = vpop.f32.mrf.mxu0
    %v115 = vpop.f32.mrf.mxu0
    %v116 = vadd.f32 %v55, %v115
    %v117 = vpop.f32.mrf.mxu0
    %118 = vdwg.mxu0
    %119 = vst.msk [vmem:[#allocation7] sm:$0xff] %vm74, %v113
    %120 = vst.msk [vmem:[#allocation7 + $0x8] sm:$0xff] %vm74, %v116
    // Predicated region
    $region22: #{tpu_custom_call.1} parent=1 // pred_check
      _
    $region23: #{tpu_custom_call.1} parent=1 // pred_check_branch
      %122 = sbr.rel (0) target = $region25
    $region24: #{tpu_custom_call.1} parent=1 // pred_region
      %s124 = ssub.s32 256, 256
      %125 = vsyncadd [#allocation4], %s124
      %s126 = sshll.u32 [#allocation7], 4
      %s127 = int_to_ptr.vmem [resolvable:$true] %s126
      %132 = dma.vmem_to_hbm [thread:$0]  %s127, 256, %s3, [#allocation4], 128, 128, 8
    $region25: #{tpu_custom_call.1} parent=1 // pred_fallthru
      _
    // Predicated region
    $region26: #{tpu_custom_call.1} parent=1 // pred_check
      _
    $region27: #{tpu_custom_call.1} parent=1 // pred_check_branch
      %134 = sbr.rel (0) target = $region29
    $region28: #{tpu_custom_call.1} parent=1 // pred_region
      %135 = dma.done [#allocation4], 256
    $region29: #{tpu_custom_call.1} parent=1 // pred_fallthru
      _
    %136 = vsyncpa [#allocation3], 1
    %137 = vsyncpa [#allocation6], 1
    %138 = vsyncpa [#allocation4], 1

</llo_original>
